<compile_context>
chip_gen: v7x
topology: tpu7x:2x2x1
jax: 0.10.0
libtpu: 0.0.40
codegen_flags: <defaults>
</compile_context>

<pallas_src>
import jax
import jax.numpy as jnp
from jax.experimental import pallas as pl
from jax.experimental.pallas import tpu as pltpu


def _additive_attention_kernel(qproj_ref, k_ref, wk_ref, wv_ref, o_ref):
    # qproj_ref: (Bb, H)     precomputed query projection (queries @ Wq^T)
    # k_ref:     (Bb, S, K)  key block for this grid step
    # wk_ref:    (K, H)      pre-transposed key projection weight
    # wv_ref:    (1, H)      scoring vector (nn.Linear(H, 1).weight)
    # o_ref:     (Bb, S)     softmax weights, lane-dense along S
    Bb, S, K = k_ref.shape
    H = wk_ref.shape[1]

    # Key projection as one big MXU matmul: (Bb*S, K) @ (K, H) -> (Bb*S, H).
    k2 = k_ref[...].reshape(Bb * S, K)
    k_proj = jnp.dot(k2, wk_ref[...], preferred_element_type=jnp.float32)
    k_proj = k_proj.reshape(Bb, S, H)

    # Broadcast-add the (per-batch) query projection and apply tanh (EUP).
    features = jnp.tanh(qproj_ref[...][:, None, :] + k_proj)       # (Bb, S, H)

    # Scores: VPU multiply by broadcast wv + lane reduction over H
    # (avoids a degenerate N=1 MXU matmul).
    scores = jnp.sum(features * wv_ref[0], axis=-1)                # (Bb, S)

    # Softmax over S (last/lane axis), max-subtracted, f32 throughout.
    m = jnp.max(scores, axis=-1, keepdims=True)
    e = jnp.exp(scores - m)
    denom = jnp.sum(e, axis=-1, keepdims=True)
    weights = e * pl.reciprocal(denom, approx=True)                # EUP vrcp

    o_ref[...] = weights.astype(o_ref.dtype)


def additive_attention(queries, keys, wq, wk, wv, *, batch_block=None):
    """queries: (B, Q), keys: (B, S, K).
    wq: (H, Q), wk: (H, K), wv: (1, H)  -- PyTorch nn.Linear weight layouts.
    Returns softmax attention weights of shape (B, S, 1)."""
    B, Q = queries.shape
    _, S, K = keys.shape
    H = wq.shape[0]

    # Hoist the (M=1 per element) query projection out of the kernel:
    # one dense (B, Q) @ (Q, H) matmul for the whole batch.
    q_proj = jnp.dot(queries.astype(jnp.float32), wq.T.astype(jnp.float32))  # (B, H)

    # Pre-transpose Wk once so the kernel never emits an XLU transpose.
    wk_t = wk.T  # (K, H)

    # Batch blocking: whole batch in one grid step for small problems; for a
    # large B use multiple-of-8 blocks so the (Bb, S) output tiles stay legal.
    # TODO(synk): for very large S, add an S grid axis with a two-pass softmax.
    if batch_block is None:
        batch_block = B
    assert B % batch_block == 0
    assert batch_block == B or batch_block % 8 == 0
    grid_b = B // batch_block

    out = pl.pallas_call(
        _additive_attention_kernel,
        out_shape=jax.ShapeDtypeStruct((B, S), queries.dtype),
        grid_spec=pltpu.PrefetchScalarGridSpec(
            num_scalar_prefetch=0,
            grid=(grid_b,),
            in_specs=[
                pl.BlockSpec((batch_block, H), lambda b: (b, 0)),        # q_proj
                pl.BlockSpec((batch_block, S, K), lambda b: (b, 0, 0)),  # keys
                pl.BlockSpec((K, H), lambda b: (0, 0)),                  # Wk^T (full)
                pl.BlockSpec((1, H), lambda b: (0, 0)),                  # Wv (full)
            ],
            out_specs=pl.BlockSpec((batch_block, S), lambda b: (b, 0)),
        ),
        compiler_params=pltpu.CompilerParams(
            dimension_semantics=("parallel",)),
    )(q_proj, keys, wk_t, wv)

    # Lane-dense (B, S) kernel output -> PyTorch's (B, S, 1) in the wrapper.
    return out.reshape(B, S, 1)


def _reference(queries, keys, wq, wk, wv):
    qp = queries[:, None, :] @ wq.T          # (B, 1, H)
    kp = keys @ wk.T                         # (B, S, H)
    feat = jnp.tanh(qp + kp)                 # (B, S, H)
    scores = feat @ wv.T                     # (B, S, 1)
    return jax.nn.softmax(scores, axis=1)


if __name__ == "__main__":
    B, S = 2, 8
    key_size, query_size, num_hiddens = 16, 16, 32

    root = jax.random.PRNGKey(0)
    k1, k2, k3, k4, k5 = jax.random.split(root, 5)

    queries = jax.random.normal(k1, (B, query_size), dtype=jnp.float32)
    keys = jax.random.normal(k2, (B, S, key_size), dtype=jnp.float32)

    # nn.Linear weight shapes: (out_features, in_features).
    wq = jax.random.normal(k3, (num_hiddens, query_size), dtype=jnp.float32) * 0.1
    wk = jax.random.normal(k4, (num_hiddens, key_size), dtype=jnp.float32) * 0.1
    wv = jax.random.normal(k5, (1, num_hiddens), dtype=jnp.float32) * 0.1

    out = additive_attention(queries, keys, wq, wk, wv)
    jax.block_until_ready(out)

    ref = _reference(queries, keys, wq, wk, wv)
    assert out.shape == (B, S, 1)
    # Slightly loose tolerance because the softmax denominator uses the
    # hardware-approximate EUP reciprocal (pl.reciprocal(..., approx=True)).
    assert jnp.allclose(out, ref, atol=1e-4, rtol=1e-4)

    print("KERNEL_OK")
</pallas_src>

<mosaic_0001>
module attributes {stable_mosaic.version = 11 : i64} {
  func.func @_additive_attention_kernel(%arg0: i32, %arg1: memref<2x32xf32, #tpu.memory_space<vmem>>, %arg2: memref<2x8x16xf32, #tpu.memory_space<vmem>>, %arg3: memref<16x32xf32, #tpu.memory_space<vmem>>, %arg4: memref<1x32xf32, #tpu.memory_space<vmem>>, %arg5: memref<2x8xf32, #tpu.memory_space<vmem>>) attributes {dimension_semantics = [#tpu.dimension_semantics<parallel>], iteration_bounds = array<i64: 1>, scalar_prefetch = 0 : i64, scratch_operands = 0 : i64, tpu.core_type = #tpu.core_type<tc>, window_params = [{transform_indices = @transform_0, window_bounds = array<i64: 2, 32>}, {transform_indices = @transform_1, window_bounds = array<i64: 2, 8, 16>}, {pipeline_mode = #tpu.pipeline_mode<synchronous>, transform_indices = @transform_2, window_bounds = array<i64: 16, 32>}, {pipeline_mode = #tpu.pipeline_mode<synchronous>, transform_indices = @transform_3, window_bounds = array<i64: 1, 32>}, {transform_indices = @transform_4, window_bounds = array<i64: 2, 8>}]} {
    %c0 = arith.constant 0 : index
    %c0_0 = arith.constant 0 : index
    %c0_1 = arith.constant 0 : index
    %0 = vector.load %arg2[%c0, %c0_0, %c0_1] : memref<2x8x16xf32, #tpu.memory_space<vmem>>, vector<2x8x16xf32>
    %1 = vector.shape_cast %0 : vector<2x8x16xf32> to vector<16x16xf32>
    %c0_2 = arith.constant 0 : index
    %c0_3 = arith.constant 0 : index
    %2 = vector.load %arg3[%c0_2, %c0_3] : memref<16x32xf32, #tpu.memory_space<vmem>>, vector<16x32xf32>
    %cst = arith.constant dense<0.000000e+00> : vector<16x32xf32>
    %3 = tpu.matmul %1, %2, %cst {dimension_numbers = #tpu.dot_dimension_numbers<[1], [0], [0], [1], [0, 0, 1, 1], [], []>} : vector<16x16xf32>, vector<16x32xf32>, vector<16x32xf32> -> vector<16x32xf32>
    %4 = vector.shape_cast %3 : vector<16x32xf32> to vector<2x8x32xf32>
    %c0_4 = arith.constant 0 : index
    %c0_5 = arith.constant 0 : index
    %5 = vector.load %arg1[%c0_4, %c0_5] : memref<2x32xf32, #tpu.memory_space<vmem>>, vector<2x32xf32>
    %6 = vector.shape_cast %5 : vector<2x32xf32> to vector<2x1x32xf32>
    %7 = vector.broadcast %6 : vector<2x1x32xf32> to vector<2x8x32xf32>
    %8 = arith.addf %7, %4 : vector<2x8x32xf32>
    %9 = math.tanh %8 : vector<2x8x32xf32>
    %c0_6 = arith.constant 0 : index
    %c0_7 = arith.constant 0 : index
    %10 = vector.load %arg4[%c0_6, %c0_7] : memref<1x32xf32, #tpu.memory_space<vmem>>, vector<1x32xf32>
    %11 = vector.shape_cast %10 : vector<1x32xf32> to vector<32xf32>
    %12 = vector.shape_cast %11 : vector<32xf32> to vector<1x1x32xf32>
    %13 = vector.broadcast %12 : vector<1x1x32xf32> to vector<2x8x32xf32>
    %14 = arith.mulf %9, %13 : vector<2x8x32xf32>
    %cst_8 = arith.constant dense<0.000000e+00> : vector<2x8xf32>
    %15 = vector.multi_reduction <add>, %14, %cst_8 [2] : vector<2x8x32xf32> to vector<2x8xf32>
    %cst_9 = arith.constant dense<0xFF800000> : vector<2xf32>
    %16 = vector.multi_reduction <maximumf>, %15, %cst_9 [1] : vector<2x8xf32> to vector<2xf32>
    %17 = vector.shape_cast %16 : vector<2xf32> to vector<2x1xf32>
    %18 = vector.broadcast %17 : vector<2x1xf32> to vector<2x8xf32>
    %19 = arith.subf %15, %18 : vector<2x8xf32>
    %20 = math.exp %19 : vector<2x8xf32>
    %cst_10 = arith.constant dense<0.000000e+00> : vector<2xf32>
    %21 = vector.multi_reduction <add>, %20, %cst_10 [1] : vector<2x8xf32> to vector<2xf32>
    %22 = vector.shape_cast %21 : vector<2xf32> to vector<2x1xf32>
    %23 = tpu.reciprocal %22 {approx = true} : vector<2x1xf32> -> vector<2x1xf32>
    %24 = vector.broadcast %23 : vector<2x1xf32> to vector<2x8xf32>
    %25 = arith.mulf %20, %24 : vector<2x8xf32>
    %c0_11 = arith.constant 0 : index
    %c0_12 = arith.constant 0 : index
    %26 = vector.load %arg5[%c0_11, %c0_12] : memref<2x8xf32, #tpu.memory_space<vmem>>, vector<2x8xf32>
    tpu.vector_store %arg5[%c0_11, %c0_12], %25 {strides = array<i32>} : memref<2x8xf32, #tpu.memory_space<vmem>>, vector<2x8xf32>,
    return
  }
  func.func @transform_0(%arg0: i32) -> (i32, i32) {
    %c0_i32 = arith.constant 0 : i32
    %c0_i32_0 = arith.constant 0 : i32
    return %arg0, %c0_i32 : i32, i32
  }
  func.func @transform_1(%arg0: i32) -> (i32, i32, i32) {
    %c0_i32 = arith.constant 0 : i32
    %c0_i32_0 = arith.constant 0 : i32
    %c0_i32_1 = arith.constant 0 : i32
    return %arg0, %c0_i32, %c0_i32_0 : i32, i32, i32
  }
  func.func @transform_2(%arg0: i32) -> (i32, i32) {
    %c0_i32 = arith.constant 0 : i32
    %c0_i32_0 = arith.constant 0 : i32
    %c0_i32_1 = arith.constant 0 : i32
    return %c0_i32, %c0_i32_0 : i32, i32
  }
  func.func @transform_3(%arg0: i32) -> (i32, i32) {
    %c0_i32 = arith.constant 0 : i32
    %c0_i32_0 = arith.constant 0 : i32
    %c0_i32_1 = arith.constant 0 : i32
    return %c0_i32, %c0_i32_0 : i32, i32
  }
  func.func @transform_4(%arg0: i32) -> (i32, i32) {
    %c0_i32 = arith.constant 0 : i32
    %c0_i32_0 = arith.constant 0 : i32
    return %arg0, %c0_i32 : i32, i32
  }
}

</mosaic_0001>

<llo_original>
// kernel: tpu_custom_call.1
$region0: #{tpu_custom_call.1}
  #allocation0 [shape = 'u32[]', space=smem, size = 0x4, offset = 0x4, fixed_abs, tag = 'smem constant byte address 0x4 - core index']
  #allocation1 [shape = 'u32[144,128]{1,0:T(1,128)}', space=vmem, size = 0x12000, scoped, tag = 'internal scratch']
  %s0 = inlined_call_operand.hbm [shape: f32[2,32], index: 0, kind: input, shape index: {}]
  %s1 = inlined_call_operand.hbm [shape: f32[2,8,16], index: 1, kind: input, shape index: {}]
  %s2 = inlined_call_operand.hbm [shape: f32[16,32], index: 2, kind: input, shape index: {}]
  %s3 = inlined_call_operand.vmem [shape: f32[1,32], index: 3, kind: input, shape index: {}]
  %s4 = inlined_call_operand.hbm [shape: f32[2,8], index: 4, kind: output, shape index: {}]
  %s5 = sld [smem:[#allocation0]]
  $region38: #{tpu_custom_call.1} parent=0
    _
  %s7 = ssub.s32 1, %s5
  %s8 = scalar_select 0, %s7, %s5
  $region1: #{tpu_custom_call.1} parent=0
    #allocation2 [shape = 'u8[1024]{0}', space=vmem, size = 0x400, scoped, tag = 'input window, operand 0, single buffered']
    #allocation3 [shape = 's32[1]{0}', space=sflag, size = 0x4, scoped, tag = 'scoped memory for tpu_custom_call.1']
    #allocation4 [shape = 's32[1]{0}', space=sflag, size = 0x4, scoped, tag = 'scoped memory for tpu_custom_call.1']
    #allocation5 [shape = 'u8[8192]{0}', space=vmem, size = 0x2000, scoped, tag = 'input window, operand 1, single buffered']
    #allocation6 [shape = 's32[1]{0}', space=sflag, size = 0x4, scoped, tag = 'scoped memory for tpu_custom_call.1']
    #allocation7 [shape = 'u8[8192]{0}', space=vmem, size = 0x2000, scoped, tag = 'input window, operand 2, single buffered']
    #allocation8 [shape = 'u8[1024]{0}', space=vmem, size = 0x400, scoped, tag = 'output window, operand 0, single buffered']
    %9 = vsyncpa [#allocation3], 0
    %10 = vsyncpa [#allocation6], 0
    %11 = vsyncpa [#allocation4], 0
    // Predicated region
    $region2: #{tpu_custom_call.1} parent=1 // pred_check
      _
    $region3: #{tpu_custom_call.1} parent=1 // pred_check_branch
      %13 = sbr.rel (0) target = $region5
    $region4: #{tpu_custom_call.1} parent=1 // pred_region
      %s15 = ssub.s32 32, 32
      %16 = vsyncadd [#allocation3], %s15
      %s18 = sshll.u32 [#allocation2], 4
      %s19 = int_to_ptr.vmem [resolvable:$true] %s18
      %21 = dma.hbm_to_vmem [thread:$0]  %s0, 32, %s19, [#allocation3]
    $region5: #{tpu_custom_call.1} parent=1 // pred_fallthru
      _
    // Predicated region
    $region6: #{tpu_custom_call.1} parent=1 // pred_check
      _
    $region7: #{tpu_custom_call.1} parent=1 // pred_check_branch
      %23 = sbr.rel (0) target = $region9
    $region8: #{tpu_custom_call.1} parent=1 // pred_region
      %s25 = ssub.s32 256, 256
      %26 = vsyncadd [#allocation6], %s25
      %s27 = sshll.u32 [#allocation5], 4
      %s28 = int_to_ptr.vmem [resolvable:$true] %s27
      %33 = dma.hbm_to_vmem [thread:$0]  %s1, 256, %s28, [#allocation6], 128, 128, 8
    $region9: #{tpu_custom_call.1} parent=1 // pred_fallthru
      _
    // Predicated region
    $region10: #{tpu_custom_call.1} parent=1 // pred_check
      _
    $region11: #{tpu_custom_call.1} parent=1 // pred_check_branch
      %35 = sbr.rel (0) target = $region13
    $region12: #{tpu_custom_call.1} parent=1 // pred_region
      %s37 = ssub.s32 256, 256
      %38 = vsyncadd [#allocation6], %s37
      %s39 = sshll.u32 [#allocation7], 4
      %s40 = int_to_ptr.vmem [resolvable:$true] %s39
      %45 = dma.hbm_to_vmem [thread:$0]  %s2, 256, %s40, [#allocation6], 128, 128, 8
    $region13: #{tpu_custom_call.1} parent=1 // pred_fallthru
      _
    // Predicated region
    $region14: #{tpu_custom_call.1} parent=1 // pred_check
      _
    $region15: #{tpu_custom_call.1} parent=1 // pred_check_branch
      %47 = sbr.rel (0) target = $region17
    $region16: #{tpu_custom_call.1} parent=1 // pred_region
      _
    $region17: #{tpu_custom_call.1} parent=1 // pred_fallthru
      _
    // Predicated region
    $region18: #{tpu_custom_call.1} parent=1 // pred_check
      _
    $region19: #{tpu_custom_call.1} parent=1 // pred_check_branch
      %49 = sbr.rel (0) target = $region21
    $region20: #{tpu_custom_call.1} parent=1 // pred_region
      %50 = dma.done [#allocation3], 32
    $region21: #{tpu_custom_call.1} parent=1 // pred_fallthru
      _
    // Predicated region
    $region22: #{tpu_custom_call.1} parent=1 // pred_check
      _
    $region23: #{tpu_custom_call.1} parent=1 // pred_check_branch
      %52 = sbr.rel (0) target = $region25
    $region24: #{tpu_custom_call.1} parent=1 // pred_region
      %53 = dma.done [#allocation6], 256
    $region25: #{tpu_custom_call.1} parent=1 // pred_fallthru
      _
    // Predicated region
    $region26: #{tpu_custom_call.1} parent=1 // pred_check
      _
    $region27: #{tpu_custom_call.1} parent=1 // pred_check_branch
      %55 = sbr.rel (0) target = $region29
    $region28: #{tpu_custom_call.1} parent=1 // pred_region
      %56 = dma.done [#allocation6], 256
    $region29: #{tpu_custom_call.1} parent=1 // pred_fallthru
      _
    %v57 = vld [vmem:[#allocation5] sm:$0xff]
    %v58 = vld [vmem:[#allocation5 + $0x8] sm:$0xff]
    %v59 = vld [vmem:[#allocation7] sm:$0xff]
    %v60 = vld [vmem:[#allocation7 + $0x8] sm:$0xff]
    %vm61 = vcmask 130048
    %v63 = vsel %vm61, %v57, 0
    %v66 = vsel %vm61, %v58, 0
    %68 = vmatprep.subr.mxu0 0.0
    %69 = vmatpush1.msra.mxu0 %v59
    %70 = vmatprep.subr.mxu0 0.0
    %71 = vmatpush1.msra.mxu0 %v60
    %72 = vmatprep.subr.mxu0 0.0
    %73 = vmatpush1.msra.mxu0 0.0
    %74 = vmatprep.subr.mxu0 0.0
    %75 = vmatpush1.msra.mxu0 0.0
    %76 = vmatprep.subr.mxu0 0.0
    %77 = vmatpush1.msra.mxu0 0.0
    %78 = vmatprep.subr.mxu0 0.0
    %79 = vmatpush1.msra.mxu0 0.0
    %80 = vmatprep.subr.mxu0 0.0
    %81 = vmatpush1.msra.mxu0 0.0
    %82 = vmatprep.subr.mxu0 0.0
    %83 = vmatpush1.msra.mxu0 0.0
    %84 = vmatprep.subr.mxu0 0.0
    %85 = vmatpush1.msra.mxu0 0.0
    %86 = vmatprep.subr.mxu0 0.0
    %87 = vmatpush1.msra.mxu0 0.0
    %88 = vmatprep.subr.mxu0 0.0
    %89 = vmatpush1.msra.mxu0 0.0
    %90 = vmatprep.subr.mxu0 0.0
    %91 = vmatpush1.msra.mxu0 0.0
    %92 = vmatprep.subr.mxu0 0.0
    %93 = vmatpush1.msra.mxu0 0.0
    %94 = vmatprep.subr.mxu0 0.0
    %95 = vmatpush1.msra.mxu0 0.0
    %96 = vmatprep.subr.mxu0 0.0
    %97 = vmatpush1.msra.mxu0 0.0
    %98 = vmatprep.subr.mxu0 0.0
    %99 = vmatpush1.msra.mxu0 0.0
    %100 = vmatprep.subr.mxu0 0.0
    %101 = vmatpush1.msra.mxu0 0.0
    %102 = vmatprep.subr.mxu0 0.0
    %103 = vmatpush1.msra.mxu0 0.0
    %104 = vmatprep.subr.mxu0 0.0
    %105 = vmatpush1.msra.mxu0 0.0
    %106 = vmatprep.subr.mxu0 0.0
    %107 = vmatpush1.msra.mxu0 0.0
    %108 = vmatprep.subr.mxu0 0.0
    %109 = vmatpush1.msra.mxu0 0.0
    %110 = vmatprep.subr.mxu0 0.0
    %111 = vmatpush1.msra.mxu0 0.0
    %112 = vmatprep.subr.mxu0 0.0
    %113 = vmatpush1.msra.mxu0 0.0
    %114 = vmatprep.subr.mxu0 0.0
    %115 = vmatpush1.msra.mxu0 0.0
    %116 = vmatprep.subr.mxu0 0.0
    %117 = vmatpush1.msra.mxu0 0.0
    %118 = vmatprep.subr.mxu0 0.0
    %119 = vmatpush1.msra.mxu0 0.0
    %120 = vmatprep.subr.mxu0 0.0
    %121 = vmatpush1.msra.mxu0 0.0
    %122 = vmatprep.subr.mxu0 0.0
    %123 = vmatpush1.msra.mxu0 0.0
    %124 = vmatprep.subr.mxu0 0.0
    %125 = vmatpush1.msra.mxu0 0.0
    %126 = vmatprep.subr.mxu0 0.0
    %127 = vmatpush1.msra.mxu0 0.0
    %128 = vmatprep.subr.mxu0 0.0
    %129 = vmatpush1.msra.mxu0 0.0
    %130 = vmatprep.subr.mxu0 0.0
    %131 = vmatpush1.msra.mxu0 0.0
    %132 = vmatprep.mubr.f32.mxu0 0.0
    %133 = vmatmul.mubr.f32.gmra.mrb[0].mxu0 %v63
    %v134 = vpop.f32.mrb[0].mxu0
    %v135 = vadd.f32 0.0, %v134
    %v136 = vpop.f32.mrb[0].mxu0
    %137 = vmatprep.mubr.f32.mxu0 0.0
    %138 = vmatmul.mubr.f32.gmra.mrb[0].mxu0 %v66
    %v139 = vpop.f32.mrb[0].mxu0
    %v140 = vadd.f32 0.0, %v139
    %v141 = vpop.f32.mrb[0].mxu0
    %142 = vdwg.mxu0
    %v143 = vld [vmem:[#allocation2] sm:$0x3]
    %v146 = vunpack.c.l.s4 1966171168
    %v147 = vunpack.c.0.s8 %v146
    %v148 = vlaneseq
    %v149 = vshrl.u32 %v148, 7
    %v150 = vsub.s32 %v147, %v149
    %v151 = vrot.slane %v143, %v150
    %v152 = vcombine.high %v151, %v151
    %v154 = vunpack.c.l.s4 1966171168
    %v155 = vunpack.c.0.s8 %v154
    %v156 = vlaneseq
    %v157 = vshrl.u32 %v156, 7
    %v158 = vsub.s32 %v155, %v157
    %v159 = vrot.slane %v151, %v158
    %v161 = vunpack.c.l.s4 1966171168
    %v162 = vunpack.c.0.s8 %v161
    %v163 = vlaneseq
    %v164 = vshrl.u32 %v163, 7
    %v165 = vsub.s32 %v162, %v164
    %v166 = vrot.slane %v152, %v165
    %v167 = vlaneseq
    %v168 = vshrl.u32 %v167, 7
    %v169 = vsub.s32 0, %v168
    %v170 = vrot.slane %v159, %v169
    %v171 = vlaneseq
    %v172 = vshrl.u32 %v171, 7
    %v173 = vsub.s32 0, %v172
    %v174 = vrot.slane %v166, %v173
    %v177 = vadd.f32 %v170, %v135
    %v178 = vadd.f32 %v174, %v140
    %v179 = vtanh.pop %v177
    %v180 = vtanh.pop %v178
    %v181 = vld [vmem:[%s3] sm:$0x1]
    %v183 = vlaneseq
    %v184 = vshrl.u32 %v183, 7
    %v185 = vsub.s32 0, %v184
    %v186 = vrot.slane %v181, %v185
    %v188 = vmul.f32 %v179, %v186
    %v189 = vmul.f32 %v180, %v186
    %vm190 = vcmask 261120
    %v191 = vsel %vm190, %v188, 0.0
    %192 = vadd.xlane.f32.xlu0 %v191
    %v193 = vpop.xlane.xlu0 %192
    %v194 = vsel %vm190, %v189, 0.0
    %195 = vadd.xlane.f32.xlu0 %v194
    %v196 = vpop.xlane.xlu0 %195
    %v199 = vlaneseq
    %v200 = vand.u32 %v199, 127
    %v201 = vlaneseq
    %v202 = vshrl.u32 %v201, 7
    %v203 = vsub.s32 %v200, %v202
    %v204 = vrot.slane %v193, %v203
    %v205 = vlaneseq
    %v206 = vshrl.u32 %v205, 7
    %v207 = vsub.s32 %v200, %v206
    %v208 = vrot.slane %v196, %v207
    %vm209 = vcmask 1041409
    %v210 = vsel %vm209, %v208, %v204
    %vm212 = vcmask 58368
    %v213 = vsel %vm212, %v210, -inf
    %214 = vmax.xlane.f32.xlu0 %v213
    %v215 = vpop.xlane.xlu0 %214
    %v217 = vlaneseq
    %v218 = vshrl.u32 %v217, 7
    %v219 = vsub.s32 0, %v218
    %v220 = vrot.slane %v215, %v219
    %v221 = vlaneseq
    %v222 = vshrl.u32 %v221, 7
    %v223 = vsub.s32 1, %v222
    %v224 = vrot.slane %v215, %v223
    %v227 = vsub.f32 %v193, %v220
    %v228 = vsub.f32 %v196, %v224
    %v229 = vmul.f32 %v227, 1.442695
    %v230 = vpow.pop %v229
    %v231 = vmul.f32 %v228, 1.442695
    %v232 = vpow.pop %v231
    %235 = vset.pattern.permute.xlu0 0
    %236 = vperm.xlu0 %235, %v230
    %v237 = vpop.permute.xlu0 %236
    %238 = vset.pattern.permute.xlu0 0
    %239 = vperm.xlu0 %238, %v232
    %v240 = vpop.permute.xlu0 %239
    %v241 = vlaneseq
    %v242 = vshrl.u32 %v241, 7
    %v243 = vsub.s32 %v200, %v242
    %v244 = vrot.slane %v237, %v243
    %v245 = vlaneseq
    %v246 = vshrl.u32 %v245, 7
    %v247 = vsub.s32 %v200, %v246
    %v248 = vrot.slane %v240, %v247
    %v249 = vsel %vm209, %v248, %v244
    %v251 = vsel %vm212, %v249, 0.0
    %252 = vadd.xlane.f32.xlu0 %v251
    %v253 = vpop.xlane.xlu0 %252
    %v254 = vrcp.pop %v253
    %v256 = vlaneseq
    %v257 = vshrl.u32 %v256, 7
    %v258 = vsub.s32 0, %v257
    %v259 = vrot.slane %v254, %v258
    %v260 = vlaneseq
    %v261 = vshrl.u32 %v260, 7
    %v262 = vsub.s32 1, %v261
    %v263 = vrot.slane %v254, %v262
    %v266 = vmul.f32 %v230, %v259
    %v267 = vmul.f32 %v232, %v263
    %270 = vset.pattern.permute.xlu0 0
    %271 = vperm.xlu0 %270, %v266
    %v272 = vpop.permute.xlu0 %271
    %273 = vset.pattern.permute.xlu0 0
    %274 = vperm.xlu0 %273, %v267
    %v275 = vpop.permute.xlu0 %274
    %v276 = vlaneseq
    %v277 = vshrl.u32 %v276, 7
    %v278 = vsub.s32 %v200, %v277
    %v279 = vrot.slane %v272, %v278
    %v280 = vlaneseq
    %v281 = vshrl.u32 %v280, 7
    %v282 = vsub.s32 %v200, %v281
    %v283 = vrot.slane %v275, %v282
    %v284 = vsel %vm209, %v283, %v279
    %286 = vst.msk [vmem:[#allocation8] sm:$0x3] %vm212, %v284
    // Predicated region
    $region30: #{tpu_custom_call.1} parent=1 // pred_check
      _
    $region31: #{tpu_custom_call.1} parent=1 // pred_check_branch
      %288 = sbr.rel (0) target = $region33
    $region32: #{tpu_custom_call.1} parent=1 // pred_region
      %s290 = ssub.s32 32, 32
      %291 = vsyncadd [#allocation4], %s290
      %s293 = sshll.u32 [#allocation8], 4
      %s294 = int_to_ptr.vmem [resolvable:$true] %s293
      %296 = dma.vmem_to_hbm [thread:$0]  %s294, 32, %s4, [#allocation4]
    $region33: #{tpu_custom_call.1} parent=1 // pred_fallthru
      _
    // Predicated region
    $region34: #{tpu_custom_call.1} parent=1 // pred_check
      _
    $region35: #{tpu_custom_call.1} parent=1 // pred_check_branch
      %298 = sbr.rel (0) target = $region37
    $region36: #{tpu_custom_call.1} parent=1 // pred_region
      %299 = dma.done [#allocation4], 32
    $region37: #{tpu_custom_call.1} parent=1 // pred_fallthru
      _
    %300 = vsyncpa [#allocation3], 1
    %301 = vsyncpa [#allocation6], 1
    %302 = vsyncpa [#allocation4], 1

</llo_original>
